<compile_context>
chip_gen: v5e
topology: v5e:2x2
jax: 0.10.0
libtpu: 0.0.40
codegen_flags: <defaults>
</compile_context>

<pallas_src>
import functools
import math

import jax
import jax.numpy as jnp
from jax import lax
from jax.experimental import pallas as pl
from jax.experimental.pallas import tpu as pltpu


# ---------------------------------------------------------------------------
# Kernel 1: fused per-head QKV projection.
# grid = (B, S // ts, H); head axis innermost so the x tile is DMA'd once per
# (b, s-tile). One (ts, dim) @ (dim, 3D) dot per head; the result is split
# into Q/K/V output tiles. Softmax scale already folded into the Q columns.
# ---------------------------------------------------------------------------
def _qkv_proj_kernel(x_ref, w_ref, q_ref, k_ref, v_ref, *, head_dim):
    x = x_ref[...].astype(jnp.bfloat16)                        # (ts, dim)
    r = jnp.dot(x, w_ref[...],
                preferred_element_type=jnp.float32)            # (ts, 3*D)
    D = head_dim
    q_ref[...] = r[:, 0 * D:1 * D].astype(q_ref.dtype)
    k_ref[...] = r[:, 1 * D:2 * D].astype(k_ref.dtype)
    v_ref[...] = r[:, 2 * D:3 * D].astype(v_ref.dtype)


# ---------------------------------------------------------------------------
# Kernel 2: flash attention + fused output projection.
# grid = (B, q-tiles, H, kv-tiles); output block depends only on (b, q-tile),
# so it stays resident while we accumulate over heads and key tiles.
# ---------------------------------------------------------------------------
def _flash_attn_kernel(q_ref, k_ref, v_ref, wo_ref, o_ref,
                       m_scr, l_scr, acc_scr, out_scr, *, wo_resident):
    h, ki = pl.program_id(2), pl.program_id(3)
    nh, nk = pl.num_programs(2), pl.num_programs(3)

    @pl.when(jnp.logical_and(h == 0, ki == 0))
    def _init_output_acc():
        out_scr[...] = jnp.zeros_like(out_scr)

    @pl.when(ki == 0)
    def _init_head():
        m_scr[...] = jnp.full_like(m_scr, -jnp.inf)
        l_scr[...] = jnp.zeros_like(l_scr)
        acc_scr[...] = jnp.zeros_like(acc_scr)

    q = q_ref[...]                                             # (tq, D) bf16 (pre-scaled)
    k = k_ref[...]                                             # (tk, D) bf16
    v = v_ref[...]                                             # (tk, D) bf16

    # scores = (q / sqrt(D)) k^T  -- scale folded into Q at projection time,
    # so no (tq, tk) VPU multiply here. bf16 operands, f32 MXU accumulation.
    s = lax.dot_general(q, k, (((1,), (1,)), ((), ())),
                        preferred_element_type=jnp.float32)    # (tq, tk)

    m_prev = m_scr[...]
    m_new = jnp.maximum(m_prev, jnp.max(s, axis=-1, keepdims=True))
    alpha = jnp.exp(m_prev - m_new)
    p = jnp.exp(s - m_new)                                     # un-normalized probs
    l_scr[...] = alpha * l_scr[...] + jnp.sum(p, axis=-1, keepdims=True)
    acc_scr[...] = alpha * acc_scr[...] + jnp.dot(
        p.astype(jnp.bfloat16), v, preferred_element_type=jnp.float32)
    m_scr[...] = m_new

    # Last key tile for this head: deferred normalization (EUP reciprocal),
    # then fold this head into the output-projection accumulator — no concat.
    @pl.when(ki == nk - 1)
    def _finish_head():
        inv_l = pl.reciprocal(l_scr[...], approx=True)         # (tq, 1)
        o_h = (acc_scr[...] * inv_l).astype(jnp.bfloat16)      # (tq, D)
        wo = wo_ref[h] if wo_resident else wo_ref[...]         # (D, dim)
        out_scr[...] += jnp.dot(o_h, wo, preferred_element_type=jnp.float32)

    @pl.when(jnp.logical_and(h == nh - 1, ki == nk - 1))
    def _finalize():
        o_ref[...] = out_scr[...].astype(o_ref.dtype)


# ---------------------------------------------------------------------------
# Wrapper helpers
# ---------------------------------------------------------------------------
def _pick_tile(s, target):
    """Largest divisor of s that is <= target and a multiple of 8 (or s itself)."""
    if s <= target:
        return s
    for t in range(target, 7, -1):
        if s % t == 0 and t % 8 == 0:
            return t
    return s


def _hw_config():
    """Generation-aware tile targets and VMEM budgets.

    v5e/v6e have 128 MiB VMEM per core -> bigger tiles + 96 MiB budget.
    v7x has 64 MiB VMEM per TensorCore -> smaller q-tiles + 48 MiB budget.
    """
    vmem_cap = 64 * 2**20  # conservative default (v7x-sized)
    try:
        info = pltpu.get_tpu_info()
        cap = getattr(info, "vmem_capacity_bytes", None)
        if cap:
            vmem_cap = int(cap)
    except Exception:
        pass
    if vmem_cap >= 100 * 2**20:   # v5e / v6e
        return dict(vmem_budget=96 * 2**20, ts_target=1024,
                    q_target=512, kv_target=256)
    else:                         # v7x
        return dict(vmem_budget=48 * 2**20, ts_target=512,
                    q_target=256, kv_target=256)


# ---------------------------------------------------------------------------
# Forward
# ---------------------------------------------------------------------------
@functools.partial(jax.jit, static_argnums=(3,),
                   static_argnames=("q_tile", "kv_tile", "seq_tile"))
def attention_forward(x, w_qkv, w_out, n_heads, *,
                      q_tile=None, kv_tile=None, seq_tile=None):
    """Forward pass of `Attention` (default flash path, eval / no dropout).

    x:     (B, S, dim)
    w_qkv: (dim, 3*dim)  -- torch attn_qkv.weight.T, '(three h d)' packed columns
    w_out: (dim, dim)    -- torch attn_out.weight.T
    Tile sizes default to per-generation values selected at trace time.
    """
    B, S, dim = x.shape
    H = n_heads
    D = dim // H
    assert dim % H == 0

    cfg = _hw_config()
    ts = _pick_tile(S, seq_tile or cfg["ts_target"])
    tq = _pick_tile(S, q_tile or cfg["q_target"])
    tk = _pick_tile(S, kv_tile or cfg["kv_target"])
    vmem_budget = int(cfg["vmem_budget"])

    # ---- weight layout reorg (pure layout, bf16 for the MXU) ---------------
    # Fused per-head QKV weight (H, dim, 3*D) with 1/sqrt(D) folded into the
    # Q columns so the flash kernel never multiplies scores by the scale.
    scale = 1.0 / math.sqrt(D)
    w3 = w_qkv.reshape(dim, 3, H, D)
    wq = w3[:, 0] * jnp.asarray(scale, w_qkv.dtype)            # (dim, H, D)
    w_fused = jnp.concatenate([wq, w3[:, 1], w3[:, 2]], axis=-1)   # (dim, H, 3D)
    w_fused = jnp.transpose(w_fused, (1, 0, 2)).astype(jnp.bfloat16)  # (H, dim, 3D)
    wo = w_out.reshape(H, D, dim).astype(jnp.bfloat16)         # (H, D, dim)

    # ---- kernel 1: fused QKV projection -> (B, H, S, D) bf16 ---------------
    qkv_shape = jax.ShapeDtypeStruct((B, H, S, D), jnp.bfloat16)
    q, k, v = pl.pallas_call(
        functools.partial(_qkv_proj_kernel, head_dim=D),
        out_shape=(qkv_shape, qkv_shape, qkv_shape),
        grid=(B, S // ts, H),
        in_specs=[
            pl.BlockSpec((None, ts, dim), lambda b, si, h: (b, si, 0)),
            pl.BlockSpec((None, dim, 3 * D), lambda b, si, h: (h, 0, 0)),
        ],
        out_specs=(
            pl.BlockSpec((None, None, ts, D), lambda b, si, h: (b, h, si, 0)),
            pl.BlockSpec((None, None, ts, D), lambda b, si, h: (b, h, si, 0)),
            pl.BlockSpec((None, None, ts, D), lambda b, si, h: (b, h, si, 0)),
        ),
        compiler_params=pltpu.CompilerParams(
            dimension_semantics=("parallel", "parallel", "parallel"),
            vmem_limit_bytes=vmem_budget),
    )(x, w_fused)

    # ---- kernel 2: flash attention + fused output projection ---------------
    out_itemsize = jnp.dtype(x.dtype).itemsize

    def _k2_footprint(resident):
        wo_bytes = (H * D * dim * 2) if resident else (D * dim * 2)
        return (2 * tq * D * 2                       # q blocks (double-buffered)
                + 2 * 2 * tk * D * 2                 # k, v blocks
                + 2 * wo_bytes                       # wo blocks
                + 2 * tq * dim * out_itemsize        # output blocks
                + (2 * tq * 128 + tq * max(D, 128) + tq * dim) * 4)  # f32 scratch

    # Keep the whole output-projection weight resident in VMEM when it fits
    # (removes the per-(b, q-tile) wo re-stream); fall back to per-head blocks
    # on v7x-sized VMEM with large dim.
    wo_resident = _k2_footprint(True) <= int(0.9 * vmem_budget)
    if wo_resident:
        wo_spec = pl.BlockSpec((H, D, dim), lambda b, qi, h, ki: (0, 0, 0))
    else:
        wo_spec = pl.BlockSpec((None, D, dim), lambda b, qi, h, ki: (h, 0, 0))

    # TODO(synk): if traces show exposed K/V DMA, add pipeline_mode=pl.Buffered(3)
    #             on the K/V in_specs.
    out = pl.pallas_call(
        functools.partial(_flash_attn_kernel, wo_resident=wo_resident),
        out_shape=jax.ShapeDtypeStruct((B, S, dim), x.dtype),
        grid=(B, S // tq, H, S // tk),
        in_specs=[
            pl.BlockSpec((None, None, tq, D), lambda b, qi, h, ki: (b, h, qi, 0)),
            pl.BlockSpec((None, None, tk, D), lambda b, qi, h, ki: (b, h, ki, 0)),
            pl.BlockSpec((None, None, tk, D), lambda b, qi, h, ki: (b, h, ki, 0)),
            wo_spec,
        ],
        out_specs=pl.BlockSpec((None, tq, dim), lambda b, qi, h, ki: (b, qi, 0)),
        scratch_shapes=[
            pltpu.VMEM((tq, 1), jnp.float32),    # running max
            pltpu.VMEM((tq, 1), jnp.float32),    # running sum
            pltpu.VMEM((tq, D), jnp.float32),    # per-head attention accumulator
            pltpu.VMEM((tq, dim), jnp.float32),  # output-projection accumulator
        ],
        compiler_params=pltpu.CompilerParams(
            dimension_semantics=("parallel", "parallel", "arbitrary", "arbitrary"),
            vmem_limit_bytes=vmem_budget),
    )(q, k, v, wo)
    return out


def attention_reference(x, w_qkv, w_out, n_heads):
    """Pure-JAX f32 reference mirroring the PyTorch flash_attn_qkvpacked path."""
    B, S, dim = x.shape
    D = dim // n_heads
    qkv = x @ w_qkv                                      # (B, S, 3*dim)
    qkv = qkv.reshape(B, S, 3, n_heads, D)
    q, k, v = qkv[:, :, 0], qkv[:, :, 1], qkv[:, :, 2]   # (B, S, H, D)
    s = jnp.einsum('bqhd,bkhd->bhqk', q, k) / math.sqrt(D)
    p = jax.nn.softmax(s, axis=-1)
    o = jnp.einsum('bhqk,bkhd->bqhd', p, v)              # (B, S, H, D)
    o = o.reshape(B, S, dim)                             # 'b s h d -> b s (h d)'
    return o @ w_out


if __name__ == "__main__":
    # Small shapes consistent with the module: dim must be divisible by n_heads.
    B, S, dim, n_heads = 2, 8, 32, 4

    key = jax.random.PRNGKey(0)
    kx, kq, ko = jax.random.split(key, 3)

    x = jax.random.normal(kx, (B, S, dim), dtype=jnp.float32)
    # Deterministic synthetic weights, stored as (in, out) = torch weight transposed.
    w_qkv = jax.random.normal(kq, (dim, 3 * dim), dtype=jnp.float32) / math.sqrt(dim)
    w_out = jax.random.normal(ko, (dim, dim), dtype=jnp.float32) / math.sqrt(dim)

    out = attention_forward(x, w_qkv, w_out, n_heads)
    out = jax.block_until_ready(out)

    ref = attention_reference(x, w_qkv, w_out, n_heads)
    assert out.shape == (B, S, dim)
    max_err = jnp.max(jnp.abs(out - ref))
    # The kernel runs the MXU in bf16 (f32 accumulation), so compare with a
    # correspondingly loose tolerance against the f32 reference.
    assert jnp.allclose(out, ref, atol=3e-2, rtol=3e-2), \
        f"mismatch: max abs err {max_err}"

    print("KERNEL_OK")
</pallas_src>

<mosaic_0001>
module attributes {stable_mosaic.version = 11 : i64} {
  func.func @_qkv_proj_kernel(%arg0: i32, %arg1: i32, %arg2: i32, %arg3: memref<1x8x32xf32, #tpu.memory_space<vmem>>, %arg4: memref<1x32x24xbf16, #tpu.memory_space<vmem>>, %arg5: memref<1x1x8x8xbf16, #tpu.memory_space<vmem>>, %arg6: memref<1x1x8x8xbf16, #tpu.memory_space<vmem>>, %arg7: memref<1x1x8x8xbf16, #tpu.memory_space<vmem>>) attributes {dimension_semantics = [#tpu.dimension_semantics<parallel>, #tpu.dimension_semantics<parallel>, #tpu.dimension_semantics<parallel>], iteration_bounds = array<i64: 2, 1, 4>, scalar_prefetch = 0 : i64, scratch_operands = 0 : i64, tpu.core_type = #tpu.core_type<tc>, window_params = [{transform_indices = @transform_0, window_bounds = array<i64: 1, 8, 32>}, {transform_indices = @transform_1, window_bounds = array<i64: 1, 32, 24>}, {transform_indices = @transform_2, window_bounds = array<i64: 1, 1, 8, 8>}, {transform_indices = @transform_3, window_bounds = array<i64: 1, 1, 8, 8>}, {transform_indices = @transform_4, window_bounds = array<i64: 1, 1, 8, 8>}]} {
    %c0 = arith.constant 0 : index
    %c0_0 = arith.constant 0 : index
    %c0_1 = arith.constant 0 : index
    %0 = vector.load %arg3[%c0, %c0_0, %c0_1] : memref<1x8x32xf32, #tpu.memory_space<vmem>>, vector<1x8x32xf32>
    %1 = vector.shape_cast %0 : vector<1x8x32xf32> to vector<8x32xf32>
    %2 = arith.truncf %1 : vector<8x32xf32> to vector<8x32xbf16>
    %c0_2 = arith.constant 0 : index
    %c0_3 = arith.constant 0 : index
    %c0_4 = arith.constant 0 : index
    %3 = vector.load %arg4[%c0_2, %c0_3, %c0_4] : memref<1x32x24xbf16, #tpu.memory_space<vmem>>, vector<1x32x24xbf16>
    %4 = vector.shape_cast %3 : vector<1x32x24xbf16> to vector<32x24xbf16>
    %cst = arith.constant dense<0.000000e+00> : vector<8x24xf32>
    %5 = tpu.matmul %2, %4, %cst {dimension_numbers = #tpu.dot_dimension_numbers<[1], [0], [0], [1], [0, 0, 1, 1], [], []>} : vector<8x32xbf16>, vector<32x24xbf16>, vector<8x24xf32> -> vector<8x24xf32>
    %6 = vector.extract_strided_slice %5 {offsets = [0, 0], sizes = [8, 8], strides = [1, 1]} : vector<8x24xf32> to vector<8x8xf32>
    %7 = arith.truncf %6 : vector<8x8xf32> to vector<8x8xbf16>
    %c0_5 = arith.constant 0 : index
    %c0_6 = arith.constant 0 : index
    %c0_7 = arith.constant 0 : index
    %c0_8 = arith.constant 0 : index
    %8 = vector.load %arg5[%c0_5, %c0_6, %c0_7, %c0_8] : memref<1x1x8x8xbf16, #tpu.memory_space<vmem>>, vector<1x1x8x8xbf16>
    %9 = vector.shape_cast %8 : vector<1x1x8x8xbf16> to vector<8x8xbf16>
    %10 = vector.shape_cast %7 : vector<8x8xbf16> to vector<1x1x8x8xbf16>
    tpu.vector_store %arg5[%c0_5, %c0_6, %c0_7, %c0_8], %10 {strides = array<i32>} : memref<1x1x8x8xbf16, #tpu.memory_space<vmem>>, vector<1x1x8x8xbf16>,
    %11 = vector.extract_strided_slice %5 {offsets = [0, 8], sizes = [8, 8], strides = [1, 1]} : vector<8x24xf32> to vector<8x8xf32>
    %12 = arith.truncf %11 : vector<8x8xf32> to vector<8x8xbf16>
    %c0_9 = arith.constant 0 : index
    %c0_10 = arith.constant 0 : index
    %c0_11 = arith.constant 0 : index
    %c0_12 = arith.constant 0 : index
    %13 = vector.load %arg6[%c0_9, %c0_10, %c0_11, %c0_12] : memref<1x1x8x8xbf16, #tpu.memory_space<vmem>>, vector<1x1x8x8xbf16>
    %14 = vector.shape_cast %13 : vector<1x1x8x8xbf16> to vector<8x8xbf16>
    %15 = vector.shape_cast %12 : vector<8x8xbf16> to vector<1x1x8x8xbf16>
    tpu.vector_store %arg6[%c0_9, %c0_10, %c0_11, %c0_12], %15 {strides = array<i32>} : memref<1x1x8x8xbf16, #tpu.memory_space<vmem>>, vector<1x1x8x8xbf16>,
    %16 = vector.extract_strided_slice %5 {offsets = [0, 16], sizes = [8, 8], strides = [1, 1]} : vector<8x24xf32> to vector<8x8xf32>
    %17 = arith.truncf %16 : vector<8x8xf32> to vector<8x8xbf16>
    %c0_13 = arith.constant 0 : index
    %c0_14 = arith.constant 0 : index
    %c0_15 = arith.constant 0 : index
    %c0_16 = arith.constant 0 : index
    %18 = vector.load %arg7[%c0_13, %c0_14, %c0_15, %c0_16] : memref<1x1x8x8xbf16, #tpu.memory_space<vmem>>, vector<1x1x8x8xbf16>
    %19 = vector.shape_cast %18 : vector<1x1x8x8xbf16> to vector<8x8xbf16>
    %20 = vector.shape_cast %17 : vector<8x8xbf16> to vector<1x1x8x8xbf16>
    tpu.vector_store %arg7[%c0_13, %c0_14, %c0_15, %c0_16], %20 {strides = array<i32>} : memref<1x1x8x8xbf16, #tpu.memory_space<vmem>>, vector<1x1x8x8xbf16>,
    return
  }
  func.func @transform_0(%arg0: i32, %arg1: i32, %arg2: i32) -> (i32, i32, i32) {
    %c0_i32 = arith.constant 0 : i32
    %c0_i32_0 = arith.constant 0 : i32
    return %arg0, %arg1, %c0_i32 : i32, i32, i32
  }
  func.func @transform_1(%arg0: i32, %arg1: i32, %arg2: i32) -> (i32, i32, i32) {
    %c0_i32 = arith.constant 0 : i32
    %c0_i32_0 = arith.constant 0 : i32
    %c0_i32_1 = arith.constant 0 : i32
    return %arg2, %c0_i32, %c0_i32_0 : i32, i32, i32
  }
  func.func @transform_2(%arg0: i32, %arg1: i32, %arg2: i32) -> (i32, i32, i32, i32) {
    %c0_i32 = arith.constant 0 : i32
    %c0_i32_0 = arith.constant 0 : i32
    return %arg0, %arg2, %arg1, %c0_i32 : i32, i32, i32, i32
  }
  func.func @transform_3(%arg0: i32, %arg1: i32, %arg2: i32) -> (i32, i32, i32, i32) {
    %c0_i32 = arith.constant 0 : i32
    %c0_i32_0 = arith.constant 0 : i32
    return %arg0, %arg2, %arg1, %c0_i32 : i32, i32, i32, i32
  }
  func.func @transform_4(%arg0: i32, %arg1: i32, %arg2: i32) -> (i32, i32, i32, i32) {
    %c0_i32 = arith.constant 0 : i32
    %c0_i32_0 = arith.constant 0 : i32
    return %arg0, %arg2, %arg1, %c0_i32 : i32, i32, i32, i32
  }
}

module attributes {stable_mosaic.version = 11 : i64} {
  func.func @_flash_attn_kernel(%arg0: i32, %arg1: i32, %arg2: i32, %arg3: i32, %arg4: memref<1x1x8x8xbf16, #tpu.memory_space<vmem>>, %arg5: memref<1x1x8x8xbf16, #tpu.memory_space<vmem>>, %arg6: memref<1x1x8x8xbf16, #tpu.memory_space<vmem>>, %arg7: memref<4x8x32xbf16, #tpu.memory_space<vmem>>, %arg8: memref<1x8x32xf32, #tpu.memory_space<vmem>>, %arg9: memref<8x1xf32, #tpu.memory_space<vmem>>, %arg10: memref<8x1xf32, #tpu.memory_space<vmem>>, %arg11: memref<8x8xf32, #tpu.memory_space<vmem>>, %arg12: memref<8x32xf32, #tpu.memory_space<vmem>>) attributes {dimension_semantics = [#tpu.dimension_semantics<parallel>, #tpu.dimension_semantics<parallel>, #tpu.dimension_semantics<arbitrary>, #tpu.dimension_semantics<arbitrary>], iteration_bounds = array<i64: 2, 1, 4, 1>, scalar_prefetch = 0 : i64, scratch_operands = 4 : i64, tpu.core_type = #tpu.core_type<tc>, window_params = [{transform_indices = @transform_0, window_bounds = array<i64: 1, 1, 8, 8>}, {transform_indices = @transform_1, window_bounds = array<i64: 1, 1, 8, 8>}, {transform_indices = @transform_2, window_bounds = array<i64: 1, 1, 8, 8>}, {pipeline_mode = #tpu.pipeline_mode<synchronous>, transform_indices = @transform_3, window_bounds = array<i64: 4, 8, 32>}, {transform_indices = @transform_4, window_bounds = array<i64: 1, 8, 32>}]} {
    %c0_i32 = arith.constant 0 : i32
    %0 = arith.cmpi eq, %arg2, %c0_i32 : i32
    %c0_i32_0 = arith.constant 0 : i32
    %1 = arith.cmpi eq, %arg3, %c0_i32_0 : i32
    %2 = arith.andi %0, %1 : i1
    %3 = arith.extui %2 : i1 to i32
    %c0_i32_1 = arith.constant 0 : i32
    %4 = arith.cmpi ne, %3, %c0_i32_1 : i32
    scf.if %4 {
      %cst_34 = arith.constant 0.000000e+00 : f32
      %46 = vector.broadcast %cst_34 : f32 to vector<8x32xf32>
      %c0_35 = arith.constant 0 : index
      %c0_36 = arith.constant 0 : index
      %47 = vector.load %arg12[%c0_35, %c0_36] : memref<8x32xf32, #tpu.memory_space<vmem>>, vector<8x32xf32>
      tpu.vector_store %arg12[%c0_35, %c0_36], %46 {strides = array<i32>} : memref<8x32xf32, #tpu.memory_space<vmem>>, vector<8x32xf32>,
    } else {
    }
    %c0_i32_2 = arith.constant 0 : i32
    %5 = arith.cmpi eq, %arg3, %c0_i32_2 : i32
    %6 = arith.extui %5 : i1 to i32
    %c0_i32_3 = arith.constant 0 : i32
    %7 = arith.cmpi ne, %6, %c0_i32_3 : i32
    scf.if %7 {
      %cst_34 = arith.constant 0xFF800000 : f32
      %46 = vector.broadcast %cst_34 : f32 to vector<8x1xf32>
      %c0_35 = arith.constant 0 : index
      %c0_36 = arith.constant 0 : index
      %47 = vector.load %arg9[%c0_35, %c0_36] : memref<8x1xf32, #tpu.memory_space<vmem>>, vector<8x1xf32>
      tpu.vector_store %arg9[%c0_35, %c0_36], %46 {strides = array<i32>} : memref<8x1xf32, #tpu.memory_space<vmem>>, vector<8x1xf32>,
      %cst_37 = arith.constant 0.000000e+00 : f32
      %48 = vector.broadcast %cst_37 : f32 to vector<8x1xf32>
      %c0_38 = arith.constant 0 : index
      %c0_39 = arith.constant 0 : index
      %49 = vector.load %arg10[%c0_38, %c0_39] : memref<8x1xf32, #tpu.memory_space<vmem>>, vector<8x1xf32>
      tpu.vector_store %arg10[%c0_38, %c0_39], %48 {strides = array<i32>} : memref<8x1xf32, #tpu.memory_space<vmem>>, vector<8x1xf32>,
      %cst_40 = arith.constant 0.000000e+00 : f32
      %50 = vector.broadcast %cst_40 : f32 to vector<8x8xf32>
      %c0_41 = arith.constant 0 : index
      %c0_42 = arith.constant 0 : index
      %51 = vector.load %arg11[%c0_41, %c0_42] : memref<8x8xf32, #tpu.memory_space<vmem>>, vector<8x8xf32>
      tpu.vector_store %arg11[%c0_41, %c0_42], %50 {strides = array<i32>} : memref<8x8xf32, #tpu.memory_space<vmem>>, vector<8x8xf32>,
    } else {
    }
    %c0 = arith.constant 0 : index
    %c0_4 = arith.constant 0 : index
    %c0_5 = arith.constant 0 : index
    %c0_6 = arith.constant 0 : index
    %8 = vector.load %arg4[%c0, %c0_4, %c0_5, %c0_6] : memref<1x1x8x8xbf16, #tpu.memory_space<vmem>>, vector<1x1x8x8xbf16>
    %9 = vector.shape_cast %8 : vector<1x1x8x8xbf16> to vector<8x8xbf16>
    %c0_7 = arith.constant 0 : index
    %c0_8 = arith.constant 0 : index
    %c0_9 = arith.constant 0 : index
    %c0_10 = arith.constant 0 : index
    %10 = vector.load %arg5[%c0_7, %c0_8, %c0_9, %c0_10] : memref<1x1x8x8xbf16, #tpu.memory_space<vmem>>, vector<1x1x8x8xbf16>
    %11 = vector.shape_cast %10 : vector<1x1x8x8xbf16> to vector<8x8xbf16>
    %c0_11 = arith.constant 0 : index
    %c0_12 = arith.constant 0 : index
    %c0_13 = arith.constant 0 : index
    %c0_14 = arith.constant 0 : index
    %12 = vector.load %arg6[%c0_11, %c0_12, %c0_13, %c0_14] : memref<1x1x8x8xbf16, #tpu.memory_space<vmem>>, vector<1x1x8x8xbf16>
    %13 = vector.shape_cast %12 : vector<1x1x8x8xbf16> to vector<8x8xbf16>
    %cst = arith.constant dense<0.000000e+00> : vector<8x8xf32>
    %14 = tpu.matmul %9, %11, %cst {dimension_numbers = #tpu.dot_dimension_numbers<[1], [1], [0], [0], [0, 0, 1, 0], [], []>} : vector<8x8xbf16>, vector<8x8xbf16>, vector<8x8xf32> -> vector<8x8xf32>
    %c0_15 = arith.constant 0 : index
    %c0_16 = arith.constant 0 : index
    %15 = vector.load %arg9[%c0_15, %c0_16] : memref<8x1xf32, #tpu.memory_space<vmem>>, vector<8x1xf32>
    %cst_17 = arith.constant dense<0xFF800000> : vector<8xf32>
    %16 = vector.multi_reduction <maximumf>, %14, %cst_17 [1] : vector<8x8xf32> to vector<8xf32>
    %17 = vector.shape_cast %16 : vector<8xf32> to vector<8x1xf32>
    %18 = arith.maximumf %15, %17 : vector<8x1xf32>
    %19 = arith.subf %15, %18 : vector<8x1xf32>
    %20 = math.exp %19 : vector<8x1xf32>
    %21 = vector.broadcast %18 : vector<8x1xf32> to vector<8x8xf32>
    %22 = arith.subf %14, %21 : vector<8x8xf32>
    %23 = math.exp %22 : vector<8x8xf32>
    %c0_18 = arith.constant 0 : index
    %c0_19 = arith.constant 0 : index
    %24 = vector.load %arg10[%c0_18, %c0_19] : memref<8x1xf32, #tpu.memory_space<vmem>>, vector<8x1xf32>
    %25 = arith.mulf %20, %24 : vector<8x1xf32>
    %cst_20 = arith.constant dense<0.000000e+00> : vector<8xf32>
    %26 = vector.multi_reduction <add>, %23, %cst_20 [1] : vector<8x8xf32> to vector<8xf32>
    %27 = vector.shape_cast %26 : vector<8xf32> to vector<8x1xf32>
    %28 = arith.addf %25, %27 : vector<8x1xf32>
    %c0_21 = arith.constant 0 : index
    %c0_22 = arith.constant 0 : index
    %29 = vector.load %arg10[%c0_21, %c0_22] : memref<8x1xf32, #tpu.memory_space<vmem>>, vector<8x1xf32>
    tpu.vector_store %arg10[%c0_21, %c0_22], %28 {strides = array<i32>} : memref<8x1xf32, #tpu.memory_space<vmem>>, vector<8x1xf32>,
    %c0_23 = arith.constant 0 : index
    %c0_24 = arith.constant 0 : index
    %30 = vector.load %arg11[%c0_23, %c0_24] : memref<8x8xf32, #tpu.memory_space<vmem>>, vector<8x8xf32>
    %31 = vector.broadcast %20 : vector<8x1xf32> to vector<8x8xf32>
    %32 = arith.mulf %31, %30 : vector<8x8xf32>
    %33 = arith.truncf %23 : vector<8x8xf32> to vector<8x8xbf16>
    %cst_25 = arith.constant dense<0.000000e+00> : vector<8x8xf32>
    %34 = tpu.matmul %33, %13, %cst_25 {dimension_numbers = #tpu.dot_dimension_numbers<[1], [0], [0], [1], [0, 0, 1, 1], [], []>} : vector<8x8xbf16>, vector<8x8xbf16>, vector<8x8xf32> -> vector<8x8xf32>
    %35 = arith.addf %32, %34 : vector<8x8xf32>
    %c0_26 = arith.constant 0 : index
    %c0_27 = arith.constant 0 : index
    %36 = vector.load %arg11[%c0_26, %c0_27] : memref<8x8xf32, #tpu.memory_space<vmem>>, vector<8x8xf32>
    tpu.vector_store %arg11[%c0_26, %c0_27], %35 {strides = array<i32>} : memref<8x8xf32, #tpu.memory_space<vmem>>, vector<8x8xf32>,
    %c0_28 = arith.constant 0 : index
    %c0_29 = arith.constant 0 : index
    %37 = vector.load %arg9[%c0_28, %c0_29] : memref<8x1xf32, #tpu.memory_space<vmem>>, vector<8x1xf32>
    tpu.vector_store %arg9[%c0_28, %c0_29], %18 {strides = array<i32>} : memref<8x1xf32, #tpu.memory_space<vmem>>, vector<8x1xf32>,
    %c0_i32_30 = arith.constant 0 : i32
    %38 = arith.cmpi eq, %arg3, %c0_i32_30 : i32
    %39 = arith.extui %38 : i1 to i32
    %c0_i32_31 = arith.constant 0 : i32
    %40 = arith.cmpi ne, %39, %c0_i32_31 : i32
    scf.if %40 {
      %c0_34 = arith.constant 0 : index
      %c0_35 = arith.constant 0 : index
      %46 = vector.load %arg10[%c0_34, %c0_35] : memref<8x1xf32, #tpu.memory_space<vmem>>, vector<8x1xf32>
      %47 = tpu.reciprocal %46 {approx = true} : vector<8x1xf32> -> vector<8x1xf32>
      %c0_36 = arith.constant 0 : index
      %c0_37 = arith.constant 0 : index
      %48 = vector.load %arg11[%c0_36, %c0_37] : memref<8x8xf32, #tpu.memory_space<vmem>>, vector<8x8xf32>
      %49 = vector.broadcast %47 : vector<8x1xf32> to vector<8x8xf32>
      %50 = arith.mulf %48, %49 : vector<8x8xf32>
      %51 = arith.truncf %50 : vector<8x8xf32> to vector<8x8xbf16>
      %52 = arith.index_cast %arg2 : i32 to index
      %c0_38 = arith.constant 0 : index
      %c0_39 = arith.constant 0 : index
      %53 = vector.load %arg7[%52, %c0_38, %c0_39] : memref<4x8x32xbf16, #tpu.memory_space<vmem>>, vector<1x8x32xbf16>
      %54 = vector.shape_cast %53 : vector<1x8x32xbf16> to vector<8x32xbf16>
      %c0_40 = arith.constant 0 : index
      %c0_41 = arith.constant 0 : index
      %55 = vector.load %arg12[%c0_40, %c0_41] : memref<8x32xf32, #tpu.memory_space<vmem>>, vector<8x32xf32>
      %cst_42 = arith.constant dense<0.000000e+00> : vector<8x32xf32>
      %56 = tpu.matmul %51, %54, %cst_42 {dimension_numbers = #tpu.dot_dimension_numbers<[1], [0], [0], [1], [0, 0, 1, 1], [], []>} : vector<8x8xbf16>, vector<8x32xbf16>, vector<8x32xf32> -> vector<8x32xf32>
      %57 = arith.addf %55, %56 : vector<8x32xf32>
      %c0_43 = arith.constant 0 : index
      %c0_44 = arith.constant 0 : index
      %58 = vector.load %arg12[%c0_43, %c0_44] : memref<8x32xf32, #tpu.memory_space<vmem>>, vector<8x32xf32>
      tpu.vector_store %arg12[%c0_43, %c0_44], %57 {strides = array<i32>} : memref<8x32xf32, #tpu.memory_space<vmem>>, vector<8x32xf32>,
    } else {
    }
    %c3_i32 = arith.constant 3 : i32
    %41 = arith.cmpi eq, %arg2, %c3_i32 : i32
    %c0_i32_32 = arith.constant 0 : i32
    %42 = arith.cmpi eq, %arg3, %c0_i32_32 : i32
    %43 = arith.andi %41, %42 : i1
    %44 = arith.extui %43 : i1 to i32
    %c0_i32_33 = arith.constant 0 : i32
    %45 = arith.cmpi ne, %44, %c0_i32_33 : i32
    scf.if %45 {
      %c0_34 = arith.constant 0 : index
      %c0_35 = arith.constant 0 : index
      %46 = vector.load %arg12[%c0_34, %c0_35] : memref<8x32xf32, #tpu.memory_space<vmem>>, vector<8x32xf32>
      %c0_36 = arith.constant 0 : index
      %c0_37 = arith.constant 0 : index
      %c0_38 = arith.constant 0 : index
      %47 = vector.load %arg8[%c0_36, %c0_37, %c0_38] : memref<1x8x32xf32, #tpu.memory_space<vmem>>, vector<1x8x32xf32>
      %48 = vector.shape_cast %47 : vector<1x8x32xf32> to vector<8x32xf32>
      %49 = vector.shape_cast %46 : vector<8x32xf32> to vector<1x8x32xf32>
      tpu.vector_store %arg8[%c0_36, %c0_37, %c0_38], %49 {strides = array<i32>} : memref<1x8x32xf32, #tpu.memory_space<vmem>>, vector<1x8x32xf32>,
    } else {
    }
    return
  }
  func.func @transform_0(%arg0: i32, %arg1: i32, %arg2: i32, %arg3: i32) -> (i32, i32, i32, i32) {
    %c0_i32 = arith.constant 0 : i32
    %c0_i32_0 = arith.constant 0 : i32
    return %arg0, %arg2, %arg1, %c0_i32 : i32, i32, i32, i32
  }
  func.func @transform_1(%arg0: i32, %arg1: i32, %arg2: i32, %arg3: i32) -> (i32, i32, i32, i32) {
    %c0_i32 = arith.constant 0 : i32
    %c0_i32_0 = arith.constant 0 : i32
    return %arg0, %arg2, %arg3, %c0_i32 : i32, i32, i32, i32
  }
  func.func @transform_2(%arg0: i32, %arg1: i32, %arg2: i32, %arg3: i32) -> (i32, i32, i32, i32) {
    %c0_i32 = arith.constant 0 : i32
    %c0_i32_0 = arith.constant 0 : i32
    return %arg0, %arg2, %arg3, %c0_i32 : i32, i32, i32, i32
  }
  func.func @transform_3(%arg0: i32, %arg1: i32, %arg2: i32, %arg3: i32) -> (i32, i32, i32) {
    %c0_i32 = arith.constant 0 : i32
    %c0_i32_0 = arith.constant 0 : i32
    %c0_i32_1 = arith.constant 0 : i32
    %c0_i32_2 = arith.constant 0 : i32
    return %c0_i32, %c0_i32_0, %c0_i32_1 : i32, i32, i32
  }
  func.func @transform_4(%arg0: i32, %arg1: i32, %arg2: i32, %arg3: i32) -> (i32, i32, i32) {
    %c0_i32 = arith.constant 0 : i32
    %c0_i32_0 = arith.constant 0 : i32
    return %arg0, %arg1, %c0_i32 : i32, i32, i32
  }
}

</mosaic_0001>

<llo_original>
// kernel: attention_forward.2
$region0: #{attention_forward.2}
  #allocation0 [shape = 'u32[]', space=smem, size = 0x4, offset = 0x4, fixed_abs, tag = 'smem constant byte address 0x4 - core index']
  #allocation1 [shape = 'u32[72,128]{1,0:T(1,128)}', space=vmem, size = 0x9000, scoped, tag = 'internal scratch']
  %s0 = inlined_call_operand.vmem [shape: f32[2,8,32], index: 0, kind: input, shape index: {}]
  %s1 = inlined_call_operand.vmem [shape: bf16[4,32,24], index: 1, kind: input, shape index: {}]
  %s2 = inlined_call_operand.vmem [shape: bf16[2,4,8,8], index: 2, kind: output, shape index: {0}]
  %s3 = inlined_call_operand.vmem [shape: bf16[2,4,8,8], index: 3, kind: output, shape index: {1}]
  %s4 = inlined_call_operand.vmem [shape: bf16[2,4,8,8], index: 4, kind: output, shape index: {2}]
  %5 = xla_tuple %s2, %s3, %s4
  %s6 = sld [smem:[#allocation0]]
  $region57: #{attention_forward.2} parent=0
    _
  %s8 = ssub.s32 1, %s6
  %s9 = scalar_select 0, %s8, %s6
  loop: start=0, step=1, limit=10
  $region2: #{attention_forward.2} parent=0 // loop_pre_header
    _
  $region3: #{attention_forward.2} parent=0 // loop_header
    %s11 = sphi 0, %s15
    %p12 = scmp.ge.s32.totalorder %s11, 10
    %s18 = sphi 0, %s37
    %s19 = sphi 0, %s33
    %s20 = sphi 0, %s29
    %s21 = sphi 0, %s18
    %s22 = sphi 0, %s19
    %s23 = sphi 0, %s20
    %s24 = sphi 0, %s21
    %s25 = sphi 0, %s22
    %s26 = sphi 0, %s23
    %s42 = sphi 0, %s44
    %s45 = sphi 0, %s42
    %s46 = sphi 0, %s45
    %s62 = sphi 0, %s46
    %s68 = sphi 0, %s70
    %s71 = sphi 0, %s68
    %s72 = sphi 0, %s71
    %s88 = sphi 0, %s72
    %s98 = sphi 0, %s100
    %s101 = sphi 0, %s98
    %s102 = sphi 0, %s101
    %s118 = sphi 0, %s102
    %s128 = sphi 0, %s130
    %s131 = sphi 0, %s128
    %s132 = sphi 0, %s131
    %s148 = sphi 0, %s132
    %s158 = sphi 0, %s160
    %s161 = sphi 0, %s158
    %s162 = sphi 0, %s161
    %s178 = sphi 0, %s162
  $region4: #{attention_forward.2} parent=0 // loop_header_branch
    %14 = sbr.rel (%p12) target = $region8
  $region5: #{attention_forward.2} parent=0 // loop_body
    %s16 = ssub.s32 %s11, 1
    %s17 = ssub.s32 %s11, 2
    %s27 = sadd.s32 1, %s20
    %p28 = scmp.ge.s32.totalorder %s27, 4
    %s29 = scalar_select %p28, 0, %s27
    %s30 = sadd.s32 1, %s19
    %s31 = scalar_select %p28, %s30, %s19
    %p32 = scmp.ge.s32.totalorder %s31, 1
    %s33 = scalar_select %p32, 0, %s31
    %s34 = sadd.s32 1, %s18
    %s35 = scalar_select %p32, %s34, %s18
    %p36 = scmp.ge.s32.totalorder %s35, 2
    %s37 = scalar_select %p36, 0, %s35
    %s38 = ssub.s32 %s18, %s37
    %s39 = ssub.s32 %s19, %s33
    %s40 = sor.u32 %s38, %s39
    %p41 = scmp.eq.s32.totalorder %s40, 0
    %s43 = sadd.s32 %s42, 1
    %s44 = scalar_select %p41, %s42, %s43
    %p47 = pneg %p41
    %p48 = scmp.eq.s32.totalorder %s11, 7
    %p49 = por %p47, %p48
    %p50 = scmp.ne.s32.totalorder %s42, %s45
    %p51 = scmp.eq.s32.totalorder %s11, 0
    %p52 = por %p50, %p51
    %p53 = scmp.ne.s32.totalorder %s42, %s45
    %p54 = scmp.eq.s32.totalorder %s16, 7
    %p55 = por %p53, %p54
    %p56 = scmp.ne.s32.totalorder %s45, %s46
    %p57 = scmp.eq.s32.totalorder %s16, 0
    %p58 = por %p56, %p57
    %p59 = scmp.ne.s32.totalorder %s45, %s46
    %p60 = scmp.eq.s32.totalorder %s17, 7
    %p61 = por %p59, %p60
    %p63 = scmp.ne.s32.totalorder %s46, %s62
    %p64 = scmp.eq.s32.totalorder %s17, 0
    %p65 = por %p63, %p64
    %s66 = ssub.s32 %s20, %s29
    %p67 = scmp.eq.s32.totalorder %s66, 0
    %s69 = sadd.s32 %s68, 1
    %s70 = scalar_select %p67, %s68, %s69
    %p73 = pneg %p67
    %p74 = scmp.eq.s32.totalorder %s11, 7
    %p75 = por %p73, %p74
    %p76 = scmp.ne.s32.totalorder %s68, %s71
    %p77 = scmp.eq.s32.totalorder %s11, 0
    %p78 = por %p76, %p77
    %p79 = scmp.ne.s32.totalorder %s68, %s71
    %p80 = scmp.eq.s32.totalorder %s16, 7
    %p81 = por %p79, %p80
    %p82 = scmp.ne.s32.totalorder %s71, %s72
    %p83 = scmp.eq.s32.totalorder %s16, 0
    %p84 = por %p82, %p83
    %p85 = scmp.ne.s32.totalorder %s71, %s72
    %p86 = scmp.eq.s32.totalorder %s17, 7
    %p87 = por %p85, %p86
    %p89 = scmp.ne.s32.totalorder %s72, %s88
    %p90 = scmp.eq.s32.totalorder %s17, 0
    %p91 = por %p89, %p90
    %s92 = ssub.s32 %s18, %s37
    %s93 = ssub.s32 %s20, %s29
    %s94 = sor.u32 %s92, %s93
    %s95 = ssub.s32 %s19, %s33
    %s96 = sor.u32 %s94, %s95
    %p97 = scmp.eq.s32.totalorder %s96, 0
    %s99 = sadd.s32 %s98, 1
    %s100 = scalar_select %p97, %s98, %s99
    %p103 = pneg %p97
    %p104 = scmp.eq.s32.totalorder %s11, 7
    %p105 = por %p103, %p104
    %p106 = scmp.ne.s32.totalorder %s98, %s101
    %p107 = scmp.eq.s32.totalorder %s11, 0
    %p108 = por %p106, %p107
    %p109 = scmp.ne.s32.totalorder %s98, %s101
    %p110 = scmp.eq.s32.totalorder %s16, 7
    %p111 = por %p109, %p110
    %p112 = scmp.ne.s32.totalorder %s101, %s102
    %p113 = scmp.eq.s32.totalorder %s16, 0
    %p114 = por %p112, %p113
    %p115 = scmp.ne.s32.totalorder %s101, %s102
    %p116 = scmp.eq.s32.totalorder %s17, 7
    %p117 = por %p115, %p116
    %p119 = scmp.ne.s32.totalorder %s102, %s118
    %p120 = scmp.eq.s32.totalorder %s17, 0
    %p121 = por %p119, %p120
    %s122 = ssub.s32 %s18, %s37
    %s123 = ssub.s32 %s20, %s29
    %s124 = sor.u32 %s122, %s123
    %s125 = ssub.s32 %s19, %s33
    %s126 = sor.u32 %s124, %s125
    %p127 = scmp.eq.s32.totalorder %s126, 0
    %s129 = sadd.s32 %s128, 1
    %s130 = scalar_select %p127, %s128, %s129
    %p133 = pneg %p127
    %p134 = scmp.eq.s32.totalorder %s11, 7
    %p135 = por %p133, %p134
    %p136 = scmp.ne.s32.totalorder %s128, %s131
    %p137 = scmp.eq.s32.totalorder %s11, 0
    %p138 = por %p136, %p137
    %p139 = scmp.ne.s32.totalorder %s128, %s131
    %p140 = scmp.eq.s32.totalorder %s16, 7
    %p141 = por %p139, %p140
    %p142 = scmp.ne.s32.totalorder %s131, %s132
    %p143 = scmp.eq.s32.totalorder %s16, 0
    %p144 = por %p142, %p143
    %p145 = scmp.ne.s32.totalorder %s131, %s132
    %p146 = scmp.eq.s32.totalorder %s17, 7
    %p147 = por %p145, %p146
    %p149 = scmp.ne.s32.totalorder %s132, %s148
    %p150 = scmp.eq.s32.totalorder %s17, 0
    %p151 = por %p149, %p150
    %s152 = ssub.s32 %s18, %s37
    %s153 = ssub.s32 %s20, %s29
    %s154 = sor.u32 %s152, %s153
    %s155 = ssub.s32 %s19, %s33
    %s156 = sor.u32 %s154, %s155
    %p157 = scmp.eq.s32.totalorder %s156, 0
    %s159 = sadd.s32 %s158, 1
    %s160 = scalar_select %p157, %s158, %s159
    %p163 = pneg %p157
    %p164 = scmp.eq.s32.totalorder %s11, 7
    %p165 = por %p163, %p164
    %p166 = scmp.ne.s32.totalorder %s158, %s161
    %p167 = scmp.eq.s32.totalorder %s11, 0
    %p168 = por %p166, %p167
    %p169 = scmp.ne.s32.totalorder %s158, %s161
    %p170 = scmp.eq.s32.totalorder %s16, 7
    %p171 = por %p169, %p170
    %p172 = scmp.ne.s32.totalorder %s161, %s162
    %p173 = scmp.eq.s32.totalorder %s16, 0
    %p174 = por %p172, %p173
    %p175 = scmp.ne.s32.totalorder %s161, %s162
    %p176 = scmp.eq.s32.totalorder %s17, 7
    %p177 = por %p175, %p176
    %p179 = scmp.ne.s32.totalorder %s162, %s178
    %p180 = scmp.eq.s32.totalorder %s17, 0
    %p181 = por %p179, %p180
    %p182 = scmp.le.s32.totalorder 1, %s11
    %p183 = scmp.lt.s32.totalorder %s11, 9
    %p184 = pnand %p182, %p183
    %p185 = pneg %p184
    // Predicated region
    $region9: #{attention_forward.2} parent=5 // pred_check
      _
    $region10: #{attention_forward.2} parent=5 // pred_check_branch
      %187 = sbr.rel (%p184) target = $region12
    $region11: #{attention_forward.2} parent=5 // pred_region
      %s188 = ssub.s32 %s11, 1
    $region12: #{attention_forward.2} parent=5 // pred_fallthru
      _
    %p189 = scmp.lt.s32.totalorder %s11, 8
    // Predicated region
    $region13: #{attention_forward.2} parent=5 // pred_check
      %p190 = pneg %p189
    $region14: #{attention_forward.2} parent=5 // pred_check_branch
      %192 = sbr.rel (%p190) target = $region16
    $region15: #{attention_forward.2} parent=5 // pred_region
      // Predicated region
      $region17: #{attention_forward.2} parent=15 // pred_check
        %p193 = pneg %p52
      $region18: #{attention_forward.2} parent=15 // pred_check_branch
        %195 = sbr.rel (%p193) target = $region20
      $region19: #{attention_forward.2} parent=15 // pred_region
        %p196 = scmp.lt.s32.totalorder %s18, 1
        %s197 = scalar_select %p196, %s18, 1
        %p198 = scmp.lt.s32.totalorder %s19, 0
        %s199 = scalar_select %p198, %s19, 0
        %s200 = sadd.s32 %s199, %s197
        %s201 = smul.addr %s200, 8
        %s202 = scalar_lea.vmem %s0, %s201
      $region20: #{attention_forward.2} parent=15 // pred_fallthru
        _
      // Predicated region
      $region21: #{attention_forward.2} parent=15 // pred_check
        %p203 = pneg %p78
      $region22: #{attention_forward.2} parent=15 // pred_check_branch
        %205 = sbr.rel (%p203) target = $region24
      $region23: #{attention_forward.2} parent=15 // pred_region
        %p206 = scmp.lt.s32.totalorder %s20, 3
        %s207 = scalar_select %p206, %s20, 3
        %s208 = smul.addr %s207, 4
        %s209 = smul.addr %s208, 4
        %s210 = scalar_lea.vmem %s1, %s209
      $region24: #{attention_forward.2} parent=15 // pred_fallthru
        _
    $region16: #{attention_forward.2} parent=5 // pred_fallthru
      _
    %p211 = scmp.le.s32.totalorder 1, %s11
    %p212 = scmp.lt.s32.totalorder %s11, 9
    %p213 = pnand %p211, %p212
    %p214 = pneg %p213
    // Predicated region
    $region25: #{attention_forward.2} parent=5 // pred_check
      _
    $region26: #{attention_forward.2} parent=5 // pred_check_branch
      %216 = sbr.rel (%p213) target = $region28
    $region27: #{attention_forward.2} parent=5 // pred_region
      %s217 = ssub.s32 %s11, 1
      %p218 = scmp.lt.s32.totalorder %s21, 1
      %s219 = scalar_select %p218, %s21, 1
      %p220 = scmp.lt.s32.totalorder %s22, 0
      %s221 = scalar_select %p220, %s22, 0
      %s222 = sadd.s32 %s221, %s219
      %s223 = smul.addr %s222, 8
      %s224 = scalar_lea.vmem %s0, %s223
      %p225 = pneg %p58
      %p226 = pneg %p55
      %p227 = scmp.lt.s32.totalorder %s23, 3
      %s228 = scalar_select %p227, %s23, 3
      %s229 = smul.addr %s228, 4
      %s230 = smul.addr %s229, 4
      %s231 = scalar_lea.vmem %s1, %s230
      %p232 = pneg %p84
      %p233 = pneg %p81
      %p234 = pneg %p114
      %p235 = pneg %p111
      %p236 = scmp.lt.s32.totalorder %s21, 1
      %s237 = scalar_select %p236, %s21, 1
      %p238 = scmp.lt.s32.totalorder %s23, 3
      %s239 = scalar_select %p238, %s23, 3
      %p240 = scmp.lt.s32.totalorder %s22, 0
      %s241 = scalar_select %p240, %s22, 0
      %s242 = sadd.s32 %s241, %s239
      %s243 = smul.addr %s237, 4
      %s244 = sadd.s32 %s242, %s243
      %s245 = smul.addr %s244, 4
      %s246 = scalar_lea.vmem %s2, %s245
      %p247 = pneg %p144
      %p248 = pneg %p141
      %p249 = scmp.lt.s32.totalorder %s21, 1
      %s250 = scalar_select %p249, %s21, 1
      %p251 = scmp.lt.s32.totalorder %s23, 3
      %s252 = scalar_select %p251, %s23, 3
      %p253 = scmp.lt.s32.totalorder %s22, 0
      %s254 = scalar_select %p253, %s22, 0
      %s255 = sadd.s32 %s254, %s252
      %s256 = smul.addr %s250, 4
      %s257 = sadd.s32 %s255, %s256
      %s258 = smul.addr %s257, 4
      %s259 = scalar_lea.vmem %s3, %s258
      %p260 = pneg %p174
      %p261 = pneg %p171
      %p262 = scmp.lt.s32.totalorder %s21, 1
      %s263 = scalar_select %p262, %s21, 1
      %p264 = scmp.lt.s32.totalorder %s23, 3
      %s265 = scalar_select %p264, %s23, 3
      %p266 = scmp.lt.s32.totalorder %s22, 0
      %s267 = scalar_select %p266, %s22, 0
      %s268 = sadd.s32 %s267, %s265
      %s269 = smul.addr %s263, 4
      %s270 = sadd.s32 %s268, %s269
      %s271 = smul.addr %s270, 4
      %s272 = scalar_lea.vmem %s4, %s271
      %p273 = scmp.lt.s32.totalorder %s21, 1
      %s274 = scalar_select %p273, %s21, 1
      %p275 = scmp.lt.s32.totalorder %s22, 0
      %s276 = scalar_select %p275, %s22, 0
      %s277 = sadd.s32 %s276, %s274
      %s278 = smul.addr %s277, 8
      %s279 = scalar_lea.vmem %s0, %s278
      %p280 = scmp.lt.s32.totalorder %s23, 3
      %s281 = scalar_select %p280, %s23, 3
      %s282 = smul.addr %s281, 4
      %s283 = smul.addr %s282, 4
      %s284 = scalar_lea.vmem %s1, %s283
      %p285 = scmp.lt.s32.totalorder %s21, 1
      %s286 = scalar_select %p285, %s21, 1
      %p287 = scmp.lt.s32.totalorder %s23, 3
      %s288 = scalar_select %p287, %s23, 3
      %p289 = scmp.lt.s32.totalorder %s22, 0
      %s290 = scalar_select %p289, %s22, 0
      %s291 = sadd.s32 %s290, %s288
      %s292 = smul.addr %s286, 4
      %s293 = sadd.s32 %s291, %s292
      %s294 = smul.addr %s293, 4
      %s295 = scalar_lea.vmem %s2, %s294
      %p296 = scmp.lt.s32.totalorder %s21, 1
      %s297 = scalar_select %p296, %s21, 1
      %p298 = scmp.lt.s32.totalorder %s23, 3
      %s299 = scalar_select %p298, %s23, 3
      %p300 = scmp.lt.s32.totalorder %s22, 0
      %s301 = scalar_select %p300, %s22, 0
      %s302 = sadd.s32 %s301, %s299
      %s303 = smul.addr %s297, 4
      %s304 = sadd.s32 %s302, %s303
      %s305 = smul.addr %s304, 4
      %s306 = scalar_lea.vmem %s3, %s305
      %p307 = scmp.lt.s32.totalorder %s21, 1
      %s308 = scalar_select %p307, %s21, 1
      %p309 = scmp.lt.s32.totalorder %s23, 3
      %s310 = scalar_select %p309, %s23, 3
      %p311 = scmp.lt.s32.totalorder %s22, 0
      %s312 = scalar_select %p311, %s22, 0
      %s313 = sadd.s32 %s312, %s310
      %s314 = smul.addr %s308, 4
      %s315 = sadd.s32 %s313, %s314
      %s316 = smul.addr %s315, 4
      %s317 = scalar_lea.vmem %s4, %s316
      %v319 = vld [vmem:[%s279] sm:$0xff]
      %v320 = vpack.c.bf16 %v319, %v319
      %v321 = vld [vmem:[%s284] sm:$0xf]
      %v322 = vld [vmem:[%s284 + $0x4] sm:$0xf]
      %v323 = vld [vmem:[%s284 + $0x8] sm:$0xf]
      %v324 = vld [vmem:[%s284 + $0xc] sm:$0xf]
      %v329 = vunpack.c.l.b16 %v321
      %v330 = vunpack.c.l.b16 %v322
      %v331 = vunpack.c.l.b16 %v323
      %v332 = vunpack.c.l.b16 %v324
      %v333 = vpack.c.b16 %v330, %v329
      %v334 = vpack.c.b16 %v332, %v331
      %vm337 = vcmask 261120
      %v339 = vsel %vm337, %v320, 0
      %341 = vmatpush.bf16.msra.mxu0 0
      %342 = vmatpush.bf16.msra.mxu0 0
      %343 = vmatpush.bf16.msra.mxu0 0
      %344 = vmatpush.bf16.msra.mxu0 0
      %345 = vmatpush.bf16.msra.mxu0 0
      %346 = vmatpush.bf16.msra.mxu0 0
      %347 = vmatpush.bf16.msra.mxu0 %v334
      %348 = vmatpush.bf16.msra.mxu0 %v333
      %349 = vmatmul.bf16.gmra.mxu0 %v339
      %v350 = vpop.f32.mrf.mxu0
      %v351 = vadd.f32 0.0, %v350
      %v352 = vpop.f32.mrf.mxu0
      %353 = vdwg.mxu0
      %v354 = vpack.c.bf16 %v351, %v351
      %vm355 = vcmask 60416
      %356 = vst.msk [vmem:[%s295] sm:$0xf] %vm355, %v354
      %358 = vrot.lane.b32.xlu0 %v354, 120
      %v359 = vpop.permute.xlu0 %358
      %361 = vst.msk [vmem:[%s306] sm:$0xf] %vm355, %v359
      %362 = vrot.lane.b32.xlu0 %v354, 112
      %v363 = vpop.permute.xlu0 %362
      %365 = vst.msk [vmem:[%s317] sm:$0xf] %vm355, %v363
      %p366 = scmp.lt.s32.totalorder %s21, 1
      %s367 = scalar_select %p366, %s21, 1
      %p368 = scmp.lt.s32.totalorder %s23, 3
      %s369 = scalar_select %p368, %s23, 3
      %p370 = scmp.lt.s32.totalorder %s22, 0
      %s371 = scalar_select %p370, %s22, 0
      %s372 = sadd.s32 %s371, %s369
      %s373 = smul.addr %s367, 4
      %s374 = sadd.s32 %s372, %s373
      %s375 = smul.addr %s374, 4
      %s376 = scalar_lea.vmem %s2, %s375
      %p377 = scmp.lt.s32.totalorder %s21, 1
      %s378 = scalar_select %p377, %s21, 1
      %p379 = scmp.lt.s32.totalorder %s23, 3
      %s380 = scalar_select %p379, %s23, 3
      %p381 = scmp.lt.s32.totalorder %s22, 0
      %s382 = scalar_select %p381, %s22, 0
      %s383 = sadd.s32 %s382, %s380
      %s384 = smul.addr %s378, 4
      %s385 = sadd.s32 %s383, %s384
      %s386 = smul.addr %s385, 4
      %s387 = scalar_lea.vmem %s3, %s386
      %p388 = scmp.lt.s32.totalorder %s21, 1
      %s389 = scalar_select %p388, %s21, 1
      %p390 = scmp.lt.s32.totalorder %s23, 3
      %s391 = scalar_select %p390, %s23, 3
      %p392 = scmp.lt.s32.totalorder %s22, 0
      %s393 = scalar_select %p392, %s22, 0
      %s394 = sadd.s32 %s393, %s391
      %s395 = smul.addr %s389, 4
      %s396 = sadd.s32 %s394, %s395
      %s397 = smul.addr %s396, 4
      %s398 = scalar_lea.vmem %s4, %s397
      // Predicated region
      $region29: #{attention_forward.2} parent=27 // pred_check
        %p399 = pneg %p111
      $region30: #{attention_forward.2} parent=27 // pred_check_branch
        %401 = sbr.rel (%p399) target = $region32
      $region31: #{attention_forward.2} parent=27 // pred_region
        _
      $region32: #{attention_forward.2} parent=27 // pred_fallthru
        _
      // Predicated region
      $region33: #{attention_forward.2} parent=27 // pred_check
        %p402 = pneg %p141
      $region34: #{attention_forward.2} parent=27 // pred_check_branch
        %404 = sbr.rel (%p402) target = $region36
      $region35: #{attention_forward.2} parent=27 // pred_region
        _
      $region36: #{attention_forward.2} parent=27 // pred_fallthru
        _
      // Predicated region
      $region37: #{attention_forward.2} parent=27 // pred_check
        %p405 = pneg %p171
      $region38: #{attention_forward.2} parent=27 // pred_check_branch
        %407 = sbr.rel (%p405) target = $region40
      $region39: #{attention_forward.2} parent=27 // pred_region
        _
      $region40: #{attention_forward.2} parent=27 // pred_fallthru
        _
    $region28: #{attention_forward.2} parent=5 // pred_fallthru
      _
    %p408 = scmp.le.s32.totalorder 2, %s11
    // Predicated region
    $region41: #{attention_forward.2} parent=5 // pred_check
      %p409 = pneg %p408
    $region42: #{attention_forward.2} parent=5 // pred_check_branch
      %411 = sbr.rel (%p409) target = $region44
    $region43: #{attention_forward.2} parent=5 // pred_region
      %s412 = ssub.s32 %s11, 2
      // Predicated region
      $region45: #{attention_forward.2} parent=43 // pred_check
        %p413 = pneg %p117
      $region46: #{attention_forward.2} parent=43 // pred_check_branch
        %415 = sbr.rel (%p413) target = $region48
      $region47: #{attention_forward.2} parent=43 // pred_region
        %p416 = scmp.lt.s32.totalorder %s24, 1
        %s417 = scalar_select %p416, %s24, 1
        %p418 = scmp.lt.s32.totalorder %s26, 3
        %s419 = scalar_select %p418, %s26, 3
        %p420 = scmp.lt.s32.totalorder %s25, 0
        %s421 = scalar_select %p420, %s25, 0
        %s422 = sadd.s32 %s421, %s419
        %s423 = smul.addr %s417, 4
        %s424 = sadd.s32 %s422, %s423
        %s425 = smul.addr %s424, 4
        %s426 = scalar_lea.vmem %s2, %s425
      $region48: #{attention_forward.2} parent=43 // pred_fallthru
        _
      // Predicated region
      $region49: #{attention_forward.2} parent=43 // pred_check
        %p427 = pneg %p147
      $region50: #{attention_forward.2} parent=43 // pred_check_branch
        %429 = sbr.rel (%p427) target = $region52
      $region51: #{attention_forward.2} parent=43 // pred_region
        %p430 = scmp.lt.s32.totalorder %s24, 1
        %s431 = scalar_select %p430, %s24, 1
        %p432 = scmp.lt.s32.totalorder %s26, 3
        %s433 = scalar_select %p432, %s26, 3
        %p434 = scmp.lt.s32.totalorder %s25, 0
        %s435 = scalar_select %p434, %s25, 0
        %s436 = sadd.s32 %s435, %s433
        %s437 = smul.addr %s431, 4
        %s438 = sadd.s32 %s436, %s437
        %s439 = smul.addr %s438, 4
        %s440 = scalar_lea.vmem %s3, %s439
      $region52: #{attention_forward.2} parent=43 // pred_fallthru
        _
      // Predicated region
      $region53: #{attention_forward.2} parent=43 // pred_check
        %p441 = pneg %p177
      $region54: #{attention_forward.2} parent=43 // pred_check_branch
        %443 = sbr.rel (%p441) target = $region56
      $region55: #{attention_forward.2} parent=43 // pred_region
        %p444 = scmp.lt.s32.totalorder %s24, 1
        %s445 = scalar_select %p444, %s24, 1
        %p446 = scmp.lt.s32.totalorder %s26, 3
        %s447 = scalar_select %p446, %s26, 3
        %p448 = scmp.lt.s32.totalorder %s25, 0
        %s449 = scalar_select %p448, %s25, 0
        %s450 = sadd.s32 %s449, %s447
        %s451 = smul.addr %s445, 4
        %s452 = sadd.s32 %s450, %s451
        %s453 = smul.addr %s452, 4
        %s454 = scalar_lea.vmem %s4, %s453
      $region56: #{attention_forward.2} parent=43 // pred_fallthru
        _
    $region44: #{attention_forward.2} parent=5 // pred_fallthru
      _
  $region6: #{attention_forward.2} parent=0 // loop_footer
    %s15 = sadd.s32 1, %s11
  $region7: #{attention_forward.2} parent=0 // loop_footer_branch
    %10 = sbr.rel target = $region3
  $region8: #{attention_forward.2} parent=0 // loop_exit
    _

// kernel: attention_forward.3
$region0: #{attention_forward.3}
  #allocation0 [shape = 'u32[]', space=smem, size = 0x4, offset = 0x4, fixed_abs, tag = 'smem constant byte address 0x4 - core index']
  #allocation1 [shape = 'u32[72,128]{1,0:T(1,128)}', space=vmem, size = 0x9000, scoped, tag = 'internal scratch']
  #allocation2 [shape = 'f32[8,1]{1,0:T(8,128)}', space=vmem, size = 0x1000, scoped, tag = 'scratch operand']
  #allocation3 [shape = 'f32[8,1]{1,0:T(8,128)}', space=vmem, size = 0x1000, scoped, tag = 'scratch operand']
  #allocation4 [shape = 'f32[8,8]{1,0:T(8,128)}', space=vmem, size = 0x1000, scoped, tag = 'scratch operand']
  #allocation5 [shape = 'f32[8,32]{1,0:T(8,128)}', space=vmem, size = 0x1000, scoped, tag = 'scratch operand']
  %s0 = inlined_call_operand.vmem [shape: bf16[2,4,8,8], index: 0, kind: input, shape index: {}]
  %s1 = inlined_call_operand.vmem [shape: bf16[2,4,8,8], index: 1, kind: input, shape index: {}]
  %s2 = inlined_call_operand.vmem [shape: bf16[2,4,8,8], index: 2, kind: input, shape index: {}]
  %s3 = inlined_call_operand.vmem [shape: bf16[4,8,32], index: 3, kind: input, shape index: {}]
  %s4 = inlined_call_operand.hbm [shape: f32[2,8,32], index: 4, kind: output, shape index: {}]
  %s5 = sld [smem:[#allocation0]]
  $region65: #{attention_forward.3} parent=0
    _
  %s7 = ssub.s32 1, %s5
  %s8 = scalar_select 0, %s7, %s5
  $region1: #{attention_forward.3} parent=0
    #allocation6 [shape = 'u8[8192]{0}', space=vmem, size = 0x2000, scoped, tag = 'output window, operand 0']
    #allocation7 [shape = 's32[2]{0}', space=sflag, size = 0x8, scoped, tag = 'scoped memory for attention_forward.3']
    %9 = vsyncpa [#allocation7], 0
    %s10 = scalar_lea.sflag [#allocation7], 1
    %11 = vsyncpa %s10, 0
    loop: start=0, step=1, limit=10
    $region2: #{attention_forward.3} parent=1 // loop_pre_header
      _
    $region3: #{attention_forward.3} parent=1 // loop_header
      %s13 = sphi 0, %s17
      %p14 = scmp.ge.s32.totalorder %s13, 10
      %s20 = sphi 0, %s46
      %s21 = sphi 0, %s42
      %s22 = sphi 0, %s38
      %s23 = sphi 0, %s34
      %s24 = sphi 0, %s20
      %s25 = sphi 0, %s21
      %s26 = sphi 0, %s22
      %s27 = sphi 0, %s23
      %s28 = sphi 0, %s24
      %s29 = sphi 0, %s25
      %s30 = sphi 0, %s26
      %s31 = sphi 0, %s27
      %s53 = sphi 0, %s55
      %s56 = sphi 0, %s53
      %s57 = sphi 0, %s56
      %s73 = sphi 0, %s57
      %s83 = sphi 0, %s85
      %s86 = sphi 0, %s83
      %s87 = sphi 0, %s86
      %s103 = sphi 0, %s87
      %s113 = sphi 0, %s115
      %s116 = sphi 0, %s113
      %s117 = sphi 0, %s116
      %s133 = sphi 0, %s117
      %s137 = sphi 0, %s137
      %s139 = sphi 0, %s137
      %s140 = sphi 0, %s139
      %s154 = sphi 0, %s140
      %s162 = sphi 0, %s164
      %s165 = sphi 0, %s162
      %s166 = sphi 0, %s165
      %s182 = sphi 0, %s166
    $region4: #{attention_forward.3} parent=1 // loop_header_branch
      %16 = sbr.rel (%p14) target = $region8
    $region5: #{attention_forward.3} parent=1 // loop_body
      %s18 = ssub.s32 %s13, 1
      %s19 = ssub.s32 %s13, 2
      %s32 = sadd.s32 1, %s23
      %p33 = scmp.ge.s32.totalorder %s32, 1
      %s34 = scalar_select %p33, 0, %s32
      %s35 = sadd.s32 1, %s22
      %s36 = scalar_select %p33, %s35, %s22
      %p37 = scmp.ge.s32.totalorder %s36, 4
      %s38 = scalar_select %p37, 0, %s36
      %s39 = sadd.s32 1, %s21
      %s40 = scalar_select %p37, %s39, %s21
      %p41 = scmp.ge.s32.totalorder %s40, 1
      %s42 = scalar_select %p41, 0, %s40
      %s43 = sadd.s32 1, %s20
      %s44 = scalar_select %p41, %s43, %s20
      %p45 = scmp.ge.s32.totalorder %s44, 2
      %s46 = scalar_select %p45, 0, %s44
      %s47 = ssub.s32 %s20, %s46
      %s48 = ssub.s32 %s22, %s38
      %s49 = sor.u32 %s47, %s48
      %s50 = ssub.s32 %s21, %s42
      %s51 = sor.u32 %s49, %s50
      %p52 = scmp.eq.s32.totalorder %s51, 0
      %s54 = sadd.s32 %s53, 1
      %s55 = scalar_select %p52, %s53, %s54
      %p58 = pneg %p52
      %p59 = scmp.eq.s32.totalorder %s13, 7
      %p60 = por %p58, %p59
      %p61 = scmp.ne.s32.totalorder %s53, %s56
      %p62 = scmp.eq.s32.totalorder %s13, 0
      %p63 = por %p61, %p62
      %p64 = scmp.ne.s32.totalorder %s53, %s56
      %p65 = scmp.eq.s32.totalorder %s18, 7
      %p66 = por %p64, %p65
      %p67 = scmp.ne.s32.totalorder %s56, %s57
      %p68 = scmp.eq.s32.totalorder %s18, 0
      %p69 = por %p67, %p68
      %p70 = scmp.ne.s32.totalorder %s56, %s57
      %p71 = scmp.eq.s32.totalorder %s19, 7
      %p72 = por %p70, %p71
      %p74 = scmp.ne.s32.totalorder %s57, %s73
      %p75 = scmp.eq.s32.totalorder %s19, 0
      %p76 = por %p74, %p75
      %s77 = ssub.s32 %s20, %s46
      %s78 = ssub.s32 %s22, %s38
      %s79 = sor.u32 %s77, %s78
      %s80 = ssub.s32 %s23, %s34
      %s81 = sor.u32 %s79, %s80
      %p82 = scmp.eq.s32.totalorder %s81, 0
      %s84 = sadd.s32 %s83, 1
      %s85 = scalar_select %p82, %s83, %s84
      %p88 = pneg %p82
      %p89 = scmp.eq.s32.totalorder %s13, 7
      %p90 = por %p88, %p89
      %p91 = scmp.ne.s32.totalorder %s83, %s86
      %p92 = scmp.eq.s32.totalorder %s13, 0
      %p93 = por %p91, %p92
      %p94 = scmp.ne.s32.totalorder %s83, %s86
      %p95 = scmp.eq.s32.totalorder %s18, 7
      %p96 = por %p94, %p95
      %p97 = scmp.ne.s32.totalorder %s86, %s87
      %p98 = scmp.eq.s32.totalorder %s18, 0
      %p99 = por %p97, %p98
      %p100 = scmp.ne.s32.totalorder %s86, %s87
      %p101 = scmp.eq.s32.totalorder %s19, 7
      %p102 = por %p100, %p101
      %p104 = scmp.ne.s32.totalorder %s87, %s103
      %p105 = scmp.eq.s32.totalorder %s19, 0
      %p106 = por %p104, %p105
      %s107 = ssub.s32 %s20, %s46
      %s108 = ssub.s32 %s22, %s38
      %s109 = sor.u32 %s107, %s108
      %s110 = ssub.s32 %s23, %s34
      %s111 = sor.u32 %s109, %s110
      %p112 = scmp.eq.s32.totalorder %s111, 0
      %s114 = sadd.s32 %s113, 1
      %s115 = scalar_select %p112, %s113, %s114
      %p118 = pneg %p112
      %p119 = scmp.eq.s32.totalorder %s13, 7
      %p120 = por %p118, %p119
      %p121 = scmp.ne.s32.totalorder %s113, %s116
      %p122 = scmp.eq.s32.totalorder %s13, 0
      %p123 = por %p121, %p122
      %p124 = scmp.ne.s32.totalorder %s113, %s116
      %p125 = scmp.eq.s32.totalorder %s18, 7
      %p126 = por %p124, %p125
      %p127 = scmp.ne.s32.totalorder %s116, %s117
      %p128 = scmp.eq.s32.totalorder %s18, 0
      %p129 = por %p127, %p128
      %p130 = scmp.ne.s32.totalorder %s116, %s117
      %p131 = scmp.eq.s32.totalorder %s19, 7
      %p132 = por %p130, %p131
      %p134 = scmp.ne.s32.totalorder %s117, %s133
      %p135 = scmp.eq.s32.totalorder %s19, 0
      %p136 = por %p134, %p135
      %s138 = sadd.s32 %s137, 1
      %p141 = scmp.eq.s32.totalorder %s13, 7
      %p142 = scmp.ne.s32.totalorder %s137, %s139
      %p143 = scmp.eq.s32.totalorder %s13, 0
      %p144 = por %p142, %p143
      %p145 = scmp.ne.s32.totalorder %s137, %s139
      %p146 = scmp.eq.s32.totalorder %s18, 7
      %p147 = por %p145, %p146
      %p148 = scmp.ne.s32.totalorder %s139, %s140
      %p149 = scmp.eq.s32.totalorder %s18, 0
      %p150 = por %p148, %p149
      %p151 = scmp.ne.s32.totalorder %s139, %s140
      %p152 = scmp.eq.s32.totalorder %s19, 7
      %p153 = por %p151, %p152
      %p155 = scmp.ne.s32.totalorder %s140, %s154
      %p156 = scmp.eq.s32.totalorder %s19, 0
      %p157 = por %p155, %p156
      %s158 = ssub.s32 %s20, %s46
      %s159 = ssub.s32 %s21, %s42
      %s160 = sor.u32 %s158, %s159
      %p161 = scmp.eq.s32.totalorder %s160, 0
      %s163 = sadd.s32 %s162, 1
      %s164 = scalar_select %p161, %s162, %s163
      %p167 = pneg %p161
      %p168 = scmp.eq.s32.totalorder %s13, 7
      %p169 = por %p167, %p168
      %p170 = scmp.ne.s32.totalorder %s162, %s165
      %p171 = scmp.eq.s32.totalorder %s13, 0
      %p172 = por %p170, %p171
      %p173 = scmp.ne.s32.totalorder %s162, %s165
      %p174 = scmp.eq.s32.totalorder %s18, 7
      %p175 = por %p173, %p174
      %p176 = scmp.ne.s32.totalorder %s165, %s166
      %p177 = scmp.eq.s32.totalorder %s18, 0
      %p178 = por %p176, %p177
      %p179 = scmp.ne.s32.totalorder %s165, %s166
      %p180 = scmp.eq.s32.totalorder %s19, 7
      %p181 = por %p179, %p180
      %p183 = scmp.ne.s32.totalorder %s166, %s182
      %p184 = scmp.eq.s32.totalorder %s19, 0
      %p185 = por %p183, %p184
      %p186 = scmp.le.s32.totalorder 1, %s13
      %p187 = scmp.lt.s32.totalorder %s13, 9
      %p188 = pnand %p186, %p187
      %p189 = pneg %p188
      // Predicated region
      $region9: #{attention_forward.3} parent=5 // pred_check
        _
      $region10: #{attention_forward.3} parent=5 // pred_check_branch
        %191 = sbr.rel (%p188) target = $region12
      $region11: #{attention_forward.3} parent=5 // pred_region
        %s192 = ssub.s32 %s13, 1
        // Predicated region
        $region13: #{attention_forward.3} parent=11 // pred_check
          %p193 = pneg %p150
        $region14: #{attention_forward.3} parent=11 // pred_check_branch
          %195 = sbr.rel (%p193) target = $region16
        $region15: #{attention_forward.3} parent=11 // pred_region
          _
        $region16: #{attention_forward.3} parent=11 // pred_fallthru
          _
      $region12: #{attention_forward.3} parent=5 // pred_fallthru
        _
      %p196 = scmp.lt.s32.totalorder %s13, 8
      // Predicated region
      $region17: #{attention_forward.3} parent=5 // pred_check
        %p197 = pneg %p196
      $region18: #{attention_forward.3} parent=5 // pred_check_branch
        %199 = sbr.rel (%p197) target = $region20
      $region19: #{attention_forward.3} parent=5 // pred_region
        // Predicated region
        $region21: #{attention_forward.3} parent=19 // pred_check
          %p200 = pneg %p63
        $region22: #{attention_forward.3} parent=19 // pred_check_branch
          %202 = sbr.rel (%p200) target = $region24
        $region23: #{attention_forward.3} parent=19 // pred_region
          %p203 = scmp.lt.s32.totalorder %s20, 1
          %s204 = scalar_select %p203, %s20, 1
          %p205 = scmp.lt.s32.totalorder %s22, 3
          %s206 = scalar_select %p205, %s22, 3
          %p207 = scmp.lt.s32.totalorder %s21, 0
          %s208 = scalar_select %p207, %s21, 0
          %s209 = sadd.s32 %s208, %s206
          %s210 = smul.addr %s204, 4
          %s211 = sadd.s32 %s209, %s210
          %s212 = smul.addr %s211, 4
          %s213 = scalar_lea.vmem %s0, %s212
        $region24: #{attention_forward.3} parent=19 // pred_fallthru
          _
        // Predicated region
        $region25: #{attention_forward.3} parent=19 // pred_check
          %p214 = pneg %p93
        $region26: #{attention_forward.3} parent=19 // pred_check_branch
          %216 = sbr.rel (%p214) target = $region28
        $region27: #{attention_forward.3} parent=19 // pred_region
          %p217 = scmp.lt.s32.totalorder %s20, 1
          %s218 = scalar_select %p217, %s20, 1
          %p219 = scmp.lt.s32.totalorder %s22, 3
          %s220 = scalar_select %p219, %s22, 3
          %p221 = scmp.lt.s32.totalorder %s23, 0
          %s222 = scalar_select %p221, %s23, 0
          %s223 = sadd.s32 %s222, %s220
          %s224 = smul.addr %s218, 4
          %s225 = sadd.s32 %s223, %s224
          %s226 = smul.addr %s225, 4
          %s227 = scalar_lea.vmem %s1, %s226
        $region28: #{attention_forward.3} parent=19 // pred_fallthru
          _
        // Predicated region
        $region29: #{attention_forward.3} parent=19 // pred_check
          %p228 = pneg %p123
        $region30: #{attention_forward.3} parent=19 // pred_check_branch
          %230 = sbr.rel (%p228) target = $region32
        $region31: #{attention_forward.3} parent=19 // pred_region
          %p231 = scmp.lt.s32.totalorder %s20, 1
          %s232 = scalar_select %p231, %s20, 1
          %p233 = scmp.lt.s32.totalorder %s22, 3
          %s234 = scalar_select %p233, %s22, 3
          %p235 = scmp.lt.s32.totalorder %s23, 0
          %s236 = scalar_select %p235, %s23, 0
          %s237 = sadd.s32 %s236, %s234
          %s238 = smul.addr %s232, 4
          %s239 = sadd.s32 %s237, %s238
          %s240 = smul.addr %s239, 4
          %s241 = scalar_lea.vmem %s2, %s240
        $region32: #{attention_forward.3} parent=19 // pred_fallthru
          _
      $region20: #{attention_forward.3} parent=5 // pred_fallthru
        _
      %p242 = scmp.le.s32.totalorder 1, %s13
      %p243 = scmp.lt.s32.totalorder %s13, 9
      %p244 = pnand %p242, %p243
      %p245 = pneg %p244
      // Predicated region
      $region33: #{attention_forward.3} parent=5 // pred_check
        _
      $region34: #{attention_forward.3} parent=5 // pred_check_branch
        %247 = sbr.rel (%p244) target = $region36
      $region35: #{attention_forward.3} parent=5 // pred_region
        %s248 = ssub.s32 %s13, 1
        %p249 = scmp.lt.s32.totalorder %s24, 1
        %s250 = scalar_select %p249, %s24, 1
        %p251 = scmp.lt.s32.totalorder %s26, 3
        %s252 = scalar_select %p251, %s26, 3
        %p253 = scmp.lt.s32.totalorder %s25, 0
        %s254 = scalar_select %p253, %s25, 0
        %s255 = sadd.s32 %s254, %s252
        %s256 = smul.addr %s250, 4
        %s257 = sadd.s32 %s255, %s256
        %s258 = smul.addr %s257, 4
        %s259 = scalar_lea.vmem %s0, %s258
        %p260 = pneg %p69
        %p261 = pneg %p66
        %p262 = scmp.lt.s32.totalorder %s24, 1
        %s263 = scalar_select %p262, %s24, 1
        %p264 = scmp.lt.s32.totalorder %s26, 3
        %s265 = scalar_select %p264, %s26, 3
        %p266 = scmp.lt.s32.totalorder %s27, 0
        %s267 = scalar_select %p266, %s27, 0
        %s268 = sadd.s32 %s267, %s265
        %s269 = smul.addr %s263, 4
        %s270 = sadd.s32 %s268, %s269
        %s271 = smul.addr %s270, 4
        %s272 = scalar_lea.vmem %s1, %s271
        %p273 = pneg %p99
        %p274 = pneg %p96
        %p275 = scmp.lt.s32.totalorder %s24, 1
        %s276 = scalar_select %p275, %s24, 1
        %p277 = scmp.lt.s32.totalorder %s26, 3
        %s278 = scalar_select %p277, %s26, 3
        %p279 = scmp.lt.s32.totalorder %s27, 0
        %s280 = scalar_select %p279, %s27, 0
        %s281 = sadd.s32 %s280, %s278
        %s282 = smul.addr %s276, 4
        %s283 = sadd.s32 %s281, %s282
        %s284 = smul.addr %s283, 4
        %s285 = scalar_lea.vmem %s2, %s284
        %p286 = pneg %p129
        %p287 = pneg %p126
        %p288 = pneg %p150
        %p289 = pneg %p147
        %p290 = pneg %p178
        %p291 = pneg %p175
        %s292 = sand.u32 %s165, 1
        %s293 = scalar_lea.sflag [#allocation7], %s292
        %s294 = sand.u32 %s165, 1
        %s295 = smul.addr %s294, 8
        %s296 = scalar_lea.vmem [#allocation6], %s295
        %p297 = scmp.lt.s32.totalorder %s24, 1
        %s298 = scalar_select %p297, %s24, 1
        %p299 = scmp.lt.s32.totalorder %s26, 3
        %s300 = scalar_select %p299, %s26, 3
        %p301 = scmp.lt.s32.totalorder %s25, 0
        %s302 = scalar_select %p301, %s25, 0
        %s303 = sadd.s32 %s302, %s300
        %s304 = smul.addr %s298, 4
        %s305 = sadd.s32 %s303, %s304
        %s306 = smul.addr %s305, 4
        %s307 = scalar_lea.vmem %s0, %s306
        %p308 = scmp.lt.s32.totalorder %s24, 1
        %s309 = scalar_select %p308, %s24, 1
        %p310 = scmp.lt.s32.totalorder %s26, 3
        %s311 = scalar_select %p310, %s26, 3
        %p312 = scmp.lt.s32.totalorder %s27, 0
        %s313 = scalar_select %p312, %s27, 0
        %s314 = sadd.s32 %s313, %s311
        %s315 = smul.addr %s309, 4
        %s316 = sadd.s32 %s314, %s315
        %s317 = smul.addr %s316, 4
        %s318 = scalar_lea.vmem %s1, %s317
        %p319 = scmp.lt.s32.totalorder %s24, 1
        %s320 = scalar_select %p319, %s24, 1
        %p321 = scmp.lt.s32.totalorder %s26, 3
        %s322 = scalar_select %p321, %s26, 3
        %p323 = scmp.lt.s32.totalorder %s27, 0
        %s324 = scalar_select %p323, %s27, 0
        %s325 = sadd.s32 %s324, %s322
        %s326 = smul.addr %s320, 4
        %s327 = sadd.s32 %s325, %s326
        %s328 = smul.addr %s327, 4
        %s329 = scalar_lea.vmem %s2, %s328
        %p331 = scmp.eq.s32.totalorder %s26, 0
        %p332 = scmp.eq.s32.totalorder %s27, 0
        %p333 = pnand %p331, %p332
        %p334 = pneg %p333
        // Predicated region
        $region37: #{attention_forward.3} parent=35 // pred_check
          _
        $region38: #{attention_forward.3} parent=35 // pred_check_branch
          %336 = sbr.rel (%p333) target = $region40
        $region39: #{attention_forward.3} parent=35 // pred_region
          %vm337 = vcmask 261120
          %338 = vst.msk [vmem:[#allocation5] sm:$0xff] %vm337, 0.0
        $region40: #{attention_forward.3} parent=35 // pred_fallthru
          _
        // Predicated region
        $region41: #{attention_forward.3} parent=35 // pred_check
          %p339 = pneg %p332
        $region42: #{attention_forward.3} parent=35 // pred_check_branch
          %341 = sbr.rel (%p339) target = $region44
        $region43: #{attention_forward.3} parent=35 // pred_region
          %vm342 = vcmask 7168
          %343 = vst.msk [vmem:[#allocation2] sm:$0xff] %vm342, -inf
          %344 = vst.msk [vmem:[#allocation3] sm:$0xff] %vm342, 0.0
          %vm345 = vcmask 64512
          %346 = vst.msk [vmem:[#allocation4] sm:$0xff] %vm345, 0.0
        $region44: #{attention_forward.3} parent=35 // pred_fallthru
          _
        %v347 = vld [vmem:[%s307] sm:$0xf]
        %v348 = vld [vmem:[%s318] sm:$0xf]
        %v349 = vld [vmem:[%s329] sm:$0xf]
        %vm350 = vcmask 64512
        %v352 = vsel %vm350, %v347, 0
        %v355 = vsel %vm350, %v348, 0
        %357 = vmatpush.bf16.xpose.msra.mxu0 0
        %358 = vmatpush.bf16.xpose.msra.mxu0 0
        %359 = vmatpush.bf16.xpose.msra.mxu0 0
        %360 = vmatpush.bf16.xpose.msra.mxu0 0
        %361 = vmatpush.bf16.xpose.msra.mxu0 0
        %362 = vmatpush.bf16.xpose.msra.mxu0 0
        %363 = vmatpush.bf16.xpose.msra.mxu0 0
        %364 = vmatpush.bf16.xpose.msra.mxu0 %v355
        %365 = vmatmul.bf16.gmra.mxu0 %v352
        %v366 = vpop.f32.mrf.mxu0
        %v367 = vadd.f32 0.0, %v366
        %v368 = vpop.f32.mrf.mxu0
        %369 = vdwg.mxu0
        %v370 = vld [vmem:[#allocation2] sm:$0xff]
        %v371 = vsel %vm350, %v367, -inf
        %372 = vmax.xlane.f32.xlu0 %v371
        %v373 = vpop.xlane.xlu0 %372
        %v374 = vmax.f32 %v370, %v373
        %v375 = vsub.f32 %v370, %v374
        %v376 = vmul.f32 %v375, 1.442695
        %v377 = vpow.pop %v376
        %379 = vset.pattern.permute.xlu0 0
        %380 = vperm.xlu0 %379, %v374
        %v381 = vpop.permute.xlu0 %380
        %v383 = vsub.f32 %v367, %v381
        %v384 = vmul.f32 %v383, 1.442695
        %v385 = vpow.pop %v384
        %v386 = vld [vmem:[#allocation3] sm:$0xff]
        %v387 = vmul.f32 %v377, %v386
        %v388 = vsel %vm350, %v385, 0.0
        %389 = vadd.xlane.f32.xlu0 %v388
        %v390 = vpop.xlane.xlu0 %389
        %v391 = vadd.f32 %v387, %v390
        %vm392 = vcmask 7168
        %393 = vst.msk [vmem:[#allocation3] sm:$0xff] %vm392, %v391
        %v394 = vld [vmem:[#allocation4] sm:$0xff]
        %396 = vset.pattern.permute.xlu0 0
        %397 = vperm.xlu0 %396, %v377
        %v398 = vpop.permute.xlu0 %397
        %v400 = vmul.f32 %v398, %v394
        %v401 = vpack.c.bf16 %v385, %v385
        %v403 = vsel %vm350, %v401, 0
        %vm405 = vcmask 1043456
        %v407 = vsel %vm405, %v349, 0
        %409 = vmatpush.bf16.msra.mxu0 0
        %410 = vmatpush.bf16.msra.mxu0 0
        %411 = vmatpush.bf16.msra.mxu0 0
        %412 = vmatpush.bf16.msra.mxu0 0
        %413 = vmatpush.bf16.msra.mxu0 0
        %414 = vmatpush.bf16.msra.mxu0 0
        %415 = vmatpush.bf16.msra.mxu0 0
        %416 = vmatpush.bf16.msra.mxu0 %v407
        %417 = vmatmul.bf16.gmra.mxu0 %v403
        %v418 = vpop.f32.mrf.mxu0
        %v419 = vadd.f32 0.0, %v418
        %v420 = vpop.f32.mrf.mxu0
        %421 = vdwg.mxu0
        %v422 = vadd.f32 %v400, %v419
        %423 = vst.msk [vmem:[#allocation4] sm:$0xff] %vm350, %v422
        %424 = vst.msk [vmem:[#allocation2] sm:$0xff] %vm392, %v374
        // Predicated region
        $region45: #{attention_forward.3} parent=35 // pred_check
          %p425 = pneg %p332
        $region46: #{attention_forward.3} parent=35 // pred_check_branch
          %427 = sbr.rel (%p425) target = $region48
        $region47: #{attention_forward.3} parent=35 // pred_region
          %v428 = vld [vmem:[#allocation3] sm:$0xff]
          %v429 = vrcp.pop %v428
          %v430 = vld [vmem:[#allocation4] sm:$0xff]
          %432 = vset.pattern.permute.xlu0 0
          %433 = vperm.xlu0 %432, %v429
          %v434 = vpop.permute.xlu0 %433
          %v436 = vmul.f32 %v430, %v434
          %v437 = vpack.c.bf16 %v436, %v436
          %s438 = smul.addr %s26, 4
          %s439 = scalar_lea.vmem %s3, %s438
          %v440 = vld [vmem:[%s439] sm:$0xf]
          %v441 = vld [vmem:[#allocation5] sm:$0xff]
          %v443 = vsel %vm350, %v437, 0
          %v446 = vsel %vm405, %v440, 0
          %448 = vmatpush.bf16.msra.mxu0 0
          %449 = vmatpush.bf16.msra.mxu0 0
          %450 = vmatpush.bf16.msra.mxu0 0
          %451 = vmatpush.bf16.msra.mxu0 0
          %452 = vmatpush.bf16.msra.mxu0 0
          %453 = vmatpush.bf16.msra.mxu0 0
          %454 = vmatpush.bf16.msra.mxu0 0
          %455 = vmatpush.bf16.msra.mxu0 %v446
          %456 = vmatmul.bf16.gmra.mxu0 %v443
          %v457 = vpop.f32.mrf.mxu0
          %v458 = vadd.f32 0.0, %v457
          %v459 = vpop.f32.mrf.mxu0
          %460 = vdwg.mxu0
          %v461 = vadd.f32 %v441, %v458
          %vm462 = vcmask 261120
          %463 = vst.msk [vmem:[#allocation5] sm:$0xff] %vm462, %v461
        $region48: #{attention_forward.3} parent=35 // pred_fallthru
          _
        %p464 = scmp.eq.s32.totalorder %s26, 3
        %p465 = pnand %p464, %p332
        %p466 = pneg %p465
        // Predicated region
        $region49: #{attention_forward.3} parent=35 // pred_check
          _
        $region50: #{attention_forward.3} parent=35 // pred_check_branch
          %468 = sbr.rel (%p465) target = $region52
        $region51: #{attention_forward.3} parent=35 // pred_region
          %v469 = vld [vmem:[#allocation5] sm:$0xff]
          %vm470 = vcmask 261120
          %471 = vst.msk [vmem:[%s296] sm:$0xff] %vm470, %v469
        $region52: #{attention_forward.3} parent=35 // pred_fallthru
          _
        %s472 = sand.u32 %s165, 1
        %s473 = scalar_lea.sflag [#allocation7], %s472
        %s474 = sand.u32 %s165, 1
        %s475 = smul.addr %s474, 8
        %s476 = scalar_lea.vmem [#allocation6], %s475
        // Predicated region
        $region53: #{attention_forward.3} parent=35 // pred_check
          %p477 = pneg %p175
        $region54: #{attention_forward.3} parent=35 // pred_check_branch
          %479 = sbr.rel (%p477) target = $region56
        $region55: #{attention_forward.3} parent=35 // pred_region
          %481 = vsyncadd %s473, 0
          %s482 = sadd.s32 %s25, %s24
          %s483 = smul.addr %s482, 8
          %s484 = scalar_lea.hbm %s4, %s483
          %s486 = sshll.u32 %s476, 4
          %s487 = int_to_ptr.vmem [resolvable:$true] %s486
          %s488 = sshll.u32 %s484, 4
          %s489 = int_to_ptr.hbm [resolvable:$true] %s488
          %491 = dma.vmem_to_hbm [thread:$0]  %s487, 128, %s489, %s473
        $region56: #{attention_forward.3} parent=35 // pred_fallthru
          _
      $region36: #{attention_forward.3} parent=5 // pred_fallthru
        _
      %p492 = scmp.le.s32.totalorder 2, %s13
      // Predicated region
      $region57: #{attention_forward.3} parent=5 // pred_check
        %p493 = pneg %p492
      $region58: #{attention_forward.3} parent=5 // pred_check_branch
        %495 = sbr.rel (%p493) target = $region60
      $region59: #{attention_forward.3} parent=5 // pred_region
        %s496 = ssub.s32 %s13, 2
        // Predicated region
        $region61: #{attention_forward.3} parent=59 // pred_check
          %p497 = pneg %p181
        $region62: #{attention_forward.3} parent=59 // pred_check_branch
          %499 = sbr.rel (%p497) target = $region64
        $region63: #{attention_forward.3} parent=59 // pred_region
          %s500 = sand.u32 %s166, 1
          %s501 = scalar_lea.sflag [#allocation7], %s500
          %s502 = sand.u32 %s166, 1
          %s503 = smul.addr %s502, 8
          %s504 = scalar_lea.vmem [#allocation6], %s503
          %506 = dma.done %s501, 128
        $region64: #{attention_forward.3} parent=59 // pred_fallthru
          _
      $region60: #{attention_forward.3} parent=5 // pred_fallthru
        _
    $region6: #{attention_forward.3} parent=1 // loop_footer
      %s17 = sadd.s32 1, %s13
    $region7: #{attention_forward.3} parent=1 // loop_footer_branch
      %12 = sbr.rel target = $region3
    $region8: #{attention_forward.3} parent=1 // loop_exit
      _
    %507 = vsyncpa [#allocation7], 1
    %s508 = scalar_lea.sflag [#allocation7], 1
    %509 = vsyncpa %s508, 1

</llo_original>
